<compile_context>
chip_gen: v7x
topology: tpu7x:2x2x1
jax: 0.10.0
libtpu: 0.0.40
codegen_flags: <defaults>
</compile_context>

<pallas_src>
import functools

import jax
import jax.numpy as jnp
from jax import lax
from jax.experimental import pallas as pl
from jax.experimental.pallas import tpu as pltpu

TEMPERATURE = 0.1
EPS = 1e-12          # F.normalize eps
EPS_SQ = EPS * EPS   # clamp on the squared norm; exactly preserves max(||x||, eps)


def _round_up(x, m):
    return ((x + m - 1) // m) * m


def _vmem_budget_bytes():
    """Generation-aware VMEM budget with ~25% headroom (v7x-conservative fallback)."""
    try:
        cap = pltpu.get_tpu_info().vmem_capacity_bytes
    except Exception:
        cap = 64 * 1024 * 1024
    return int(cap * 0.75)


def _infonce_kernel(q_ref, p_ref, y_ref, out_ref, *, inv_t, tm, n_true, m_true,
                    mask_rows, mask_cols, p_resident):
    i = pl.program_id(0)
    j = pl.program_id(1)

    # Fused L2-normalize of the q tile, with 1/temperature folded in
    # (single EUP rsqrt; EPS^2 clamp exactly reproduces max(||q||, eps)).
    q = q_ref[...].astype(jnp.float32)
    q_inv = lax.rsqrt(jnp.maximum(jnp.sum(q * q, axis=-1, keepdims=True), EPS_SQ))
    qn = q * (q_inv * inv_t)

    # p panel: either sliced out of the VMEM-resident full matrix, or the
    # streamed (tm, D) block.  Normalized in-kernel (cost ~1/tn of the matmul).
    if p_resident:
        start = pl.multiple_of(j * tm, tm)
        p = p_ref[pl.ds(start, tm), :].astype(jnp.float32)
    else:
        p = p_ref[...].astype(jnp.float32)
    p_inv = lax.rsqrt(jnp.maximum(jnp.sum(p * p, axis=-1, keepdims=True), EPS_SQ))
    pn = p * p_inv

    y = y_ref[...].astype(jnp.float32)

    # z = (q/||q||/T) @ (p/||p||)^T via D-vs-D contraction (no transpose of p).
    z = lax.dot_general(
        qn, pn,
        dimension_numbers=(((1,), (1,)), ((), ())),
        preferred_element_type=jnp.float32)

    # Numerically stable BCE-with-logits (matches PyTorch):
    #   loss = max(z, 0) - z*y + log1p(exp(-|z|))
    loss = jnp.maximum(z, 0.0) - z * y + jnp.log1p(jnp.exp(-jnp.abs(z)))

    tn_, tm_ = loss.shape

    # Zero out padded rows / cols before the partial reduction.
    if mask_rows or mask_cols:
        valid = None
        if mask_rows:
            rows = lax.broadcasted_iota(jnp.int32, (tn_, tm_), 0) + i * tn_
            valid = rows < n_true
        if mask_cols:
            cols = lax.broadcasted_iota(jnp.int32, (tn_, tm_), 1) + j * tm_
            vc = cols < m_true
            valid = vc if valid is None else (valid & vc)
        loss = jnp.where(valid, loss, 0.0)

    # Collapse sublane groups with pure VPU adds into a lane-dense (8, tm)
    # partial; each (i, j) step owns its own output block (no accumulation,
    # so both grid axes stay "parallel" for megacore).
    out_ref[...] = loss.reshape(tn_ // 8, 8, tm_).sum(axis=0)


def infonce_loss(query, positive_key, labels, temperature=TEMPERATURE):
    """query: (N, D), positive_key: (M, D), labels: (N, M) -> scalar f32 loss."""
    n, d = query.shape
    m, d2 = positive_key.shape
    assert d == d2 and labels.shape == (n, m)

    budget = _vmem_budget_bytes()

    # Preferred 512 tiles, (8, 128)-aligned via padding.
    tn = min(512, _round_up(n, 8))
    tm = min(512, _round_up(m, 128))

    def ws_bytes(tn_, tm_, p_resident, mp_):
        # double-buffered q + p (+ resident pn) + labels + output partial, f32
        q_b = 2 * tn_ * d * 4
        p_b = 2 * (mp_ if p_resident else tm_) * d * 4
        y_b = 2 * tn_ * tm_ * 4
        o_b = 2 * 8 * tm_ * 4
        return q_b + p_b + y_b + o_b

    # Shrink tiles (D-aware) until the streamed working set fits the budget.
    while ws_bytes(tn, tm, False, 0) > budget and (tn > 8 or tm > 128):
        if tn * d >= tm * d and tn > 8:
            tn = max(8, tn // 2)
        elif tm > 128:
            tm = max(128, tm // 2)
        else:
            tn = max(8, tn // 2)
    # TODO(synk): for extremely large D even minimal (8, 128) tiles can exceed
    # VMEM; a D (contraction) grid axis with a (tn, tm) f32 accumulator would be
    # needed in that regime.

    n_pad = _round_up(n, tn)
    m_pad = _round_up(m, tm)
    gn, gm = n_pad // tn, m_pad // tm

    # Keep positive_key resident in VMEM when it fits (removes the gn*M*D re-stream).
    p_resident = ws_bytes(tn, tm, True, m_pad) <= budget

    f32 = jnp.float32
    qp = query.astype(f32)
    pp = positive_key.astype(f32)
    yp = labels.astype(f32)
    if n_pad != n:
        qp = jnp.pad(qp, ((0, n_pad - n), (0, 0)))
    if m_pad != m:
        pp = jnp.pad(pp, ((0, m_pad - m), (0, 0)))
    if n_pad != n or m_pad != m:
        yp = jnp.pad(yp, ((0, n_pad - n), (0, m_pad - m)))

    if p_resident:
        p_spec = pl.BlockSpec((m_pad, d), lambda i, j: (0, 0))
    else:
        p_spec = pl.BlockSpec((tm, d), lambda i, j: (j, 0))

    kernel = functools.partial(
        _infonce_kernel,
        inv_t=1.0 / float(temperature),
        tm=tm,
        n_true=n,
        m_true=m,
        mask_rows=(n_pad != n),
        mask_cols=(m_pad != m),
        p_resident=p_resident,
    )

    p_stream_bytes = (m_pad * d * 4) if p_resident else (gn * m_pad * d * 4)
    partials = pl.pallas_call(
        kernel,
        out_shape=jax.ShapeDtypeStruct((gn * 8, m_pad), jnp.float32),
        grid=(gn, gm),
        in_specs=[
            pl.BlockSpec((tn, d), lambda i, j: (i, 0)),
            p_spec,
            pl.BlockSpec((tn, tm), lambda i, j: (i, j)),
        ],
        out_specs=pl.BlockSpec((8, tm), lambda i, j: (i, j)),
        compiler_params=pltpu.CompilerParams(
            dimension_semantics=("parallel", "parallel"),
            vmem_limit_bytes=budget),
        cost_estimate=pl.CostEstimate(
            flops=2 * n_pad * m_pad * d + 8 * n_pad * m_pad + 3 * (n_pad + m_pad) * d,
            transcendentals=2 * n_pad * m_pad,
            bytes_accessed=4 * (n_pad * d + n_pad * m_pad + gn * 8 * m_pad)
            + p_stream_bytes),
    )(qp, pp, yp)

    # Tiny final reduction + single mean-divide outside the hot loop.
    return jnp.sum(partials) / jnp.float32(n * m)


def _reference(query, positive_key, labels, temperature=TEMPERATURE):
    qn = query / jnp.maximum(jnp.linalg.norm(query, axis=-1, keepdims=True), EPS)
    pn = positive_key / jnp.maximum(
        jnp.linalg.norm(positive_key, axis=-1, keepdims=True), EPS)
    z = (qn @ pn.T) / temperature
    loss = jnp.maximum(z, 0.0) - z * labels + jnp.log1p(jnp.exp(-jnp.abs(z)))
    return jnp.mean(loss)


if __name__ == "__main__":
    # Small shapes consistent with the forward: N queries, M keys, D features.
    N, M, D = 8, 16, 32
    key = jax.random.PRNGKey(0)
    kq, kp, kl = jax.random.split(key, 3)

    query = jax.random.normal(kq, (N, D), dtype=jnp.float32)
    positive_key = jax.random.normal(kp, (M, D), dtype=jnp.float32)
    # labels for BCE-with-logits: values in [0, 1]
    labels = jax.random.uniform(kl, (N, M), dtype=jnp.float32)

    loss = infonce_loss(query, positive_key, labels)
    loss = jax.block_until_ready(loss)

    ref = _reference(query, positive_key, labels)
    assert jnp.allclose(loss, ref, atol=1e-5, rtol=1e-5), (loss, ref)

    print("KERNEL_OK")
</pallas_src>

<mosaic_0001>
module attributes {stable_mosaic.version = 11 : i64} {
  func.func @_infonce_kernel(%arg0: i32, %arg1: i32, %arg2: memref<8x32xf32, #tpu.memory_space<vmem>>, %arg3: memref<128x32xf32, #tpu.memory_space<vmem>>, %arg4: memref<8x128xf32, #tpu.memory_space<vmem>>, %arg5: memref<8x128xf32, #tpu.memory_space<vmem>>) attributes {dimension_semantics = [#tpu.dimension_semantics<parallel>, #tpu.dimension_semantics<parallel>], iteration_bounds = array<i64: 1, 1>, scalar_prefetch = 0 : i64, scratch_operands = 0 : i64, tpu.core_type = #tpu.core_type<tc>, window_params = [{transform_indices = @transform_0, window_bounds = array<i64: 8, 32>}, {pipeline_mode = #tpu.pipeline_mode<synchronous>, transform_indices = @transform_1, window_bounds = array<i64: 128, 32>}, {transform_indices = @transform_2, window_bounds = array<i64: 8, 128>}, {transform_indices = @transform_3, window_bounds = array<i64: 8, 128>}]} {
    %c0 = arith.constant 0 : index
    %c0_0 = arith.constant 0 : index
    %0 = vector.load %arg2[%c0, %c0_0] : memref<8x32xf32, #tpu.memory_space<vmem>>, vector<8x32xf32>
    %1 = arith.mulf %0, %0 : vector<8x32xf32>
    %cst = arith.constant dense<0.000000e+00> : vector<8xf32>
    %2 = vector.multi_reduction <add>, %1, %cst [1] : vector<8x32xf32> to vector<8xf32>
    %3 = vector.shape_cast %2 : vector<8xf32> to vector<8x1xf32>
    %cst_1 = arith.constant 1.000000e-24 : f32
    %4 = vector.broadcast %cst_1 : f32 to vector<8x1xf32>
    %5 = arith.maximumf %3, %4 : vector<8x1xf32>
    %6 = math.rsqrt %5 : vector<8x1xf32>
    %cst_2 = arith.constant 1.000000e+01 : f32
    %7 = vector.broadcast %cst_2 : f32 to vector<8x1xf32>
    %8 = arith.mulf %6, %7 : vector<8x1xf32>
    %9 = vector.broadcast %8 : vector<8x1xf32> to vector<8x32xf32>
    %10 = arith.mulf %0, %9 : vector<8x32xf32>
    %c128_i32 = arith.constant 128 : i32
    %11 = arith.muli %arg1, %c128_i32 : i32
    %12 = tpu.assume_multiple %11, 128 : i32
    %13 = arith.index_cast %12 : i32 to index
    %c0_3 = arith.constant 0 : index
    %14 = vector.load %arg3[%13, %c0_3] : memref<128x32xf32, #tpu.memory_space<vmem>>, vector<128x32xf32>
    %15 = arith.mulf %14, %14 : vector<128x32xf32>
    %cst_4 = arith.constant dense<0.000000e+00> : vector<128xf32>
    %16 = vector.multi_reduction <add>, %15, %cst_4 [1] : vector<128x32xf32> to vector<128xf32>
    %17 = vector.shape_cast %16 : vector<128xf32> to vector<128x1xf32>
    %cst_5 = arith.constant 1.000000e-24 : f32
    %18 = vector.broadcast %cst_5 : f32 to vector<128x1xf32>
    %19 = arith.maximumf %17, %18 : vector<128x1xf32>
    %20 = math.rsqrt %19 : vector<128x1xf32>
    %21 = vector.broadcast %20 : vector<128x1xf32> to vector<128x32xf32>
    %22 = arith.mulf %14, %21 : vector<128x32xf32>
    %c0_6 = arith.constant 0 : index
    %c0_7 = arith.constant 0 : index
    %23 = vector.load %arg4[%c0_6, %c0_7] : memref<8x128xf32, #tpu.memory_space<vmem>>, vector<8x128xf32>
    %cst_8 = arith.constant dense<0.000000e+00> : vector<8x128xf32>
    %24 = tpu.matmul %10, %22, %cst_8 {dimension_numbers = #tpu.dot_dimension_numbers<[1], [1], [0], [0], [0, 0, 1, 0], [], []>} : vector<8x32xf32>, vector<128x32xf32>, vector<8x128xf32> -> vector<8x128xf32>
    %cst_9 = arith.constant 0.000000e+00 : f32
    %25 = vector.broadcast %cst_9 : f32 to vector<8x128xf32>
    %26 = arith.maximumf %24, %25 : vector<8x128xf32>
    %27 = arith.mulf %24, %23 : vector<8x128xf32>
    %28 = arith.subf %26, %27 : vector<8x128xf32>
    %29 = math.absf %24 : vector<8x128xf32>
    %cst_10 = arith.constant 0.000000e+00 : f32
    %30 = vector.broadcast %cst_10 : f32 to vector<8x128xf32>
    %31 = arith.subf %30, %29 : vector<8x128xf32>
    %32 = math.exp %31 : vector<8x128xf32>
    %33 = math.log1p %32 : vector<8x128xf32>
    %34 = arith.addf %28, %33 : vector<8x128xf32>
    %35 = tpu.iota {dimensions = array<i32: 1>} : vector<8x128xi32>
    %c128_i32_11 = arith.constant 128 : i32
    %36 = arith.muli %arg1, %c128_i32_11 : i32
    %37 = vector.broadcast %36 : i32 to vector<8x128xi32>
    %38 = arith.addi %35, %37 : vector<8x128xi32>
    %c16_i32 = arith.constant 16 : i32
    %39 = vector.broadcast %c16_i32 : i32 to vector<8x128xi32>
    %40 = arith.cmpi slt, %38, %39 : vector<8x128xi32>
    %cst_12 = arith.constant 0.000000e+00 : f32
    %41 = vector.broadcast %cst_12 : f32 to vector<8x128xf32>
    %42 = arith.select %40, %34, %41 : vector<8x128xi1>, vector<8x128xf32>
    %43 = vector.shape_cast %42 : vector<8x128xf32> to vector<1x8x128xf32>
    %cst_13 = arith.constant dense<0.000000e+00> : vector<8x128xf32>
    %44 = vector.multi_reduction <add>, %43, %cst_13 [0] : vector<1x8x128xf32> to vector<8x128xf32>
    %c0_14 = arith.constant 0 : index
    %c0_15 = arith.constant 0 : index
    %45 = vector.load %arg5[%c0_14, %c0_15] : memref<8x128xf32, #tpu.memory_space<vmem>>, vector<8x128xf32>
    tpu.vector_store %arg5[%c0_14, %c0_15], %44 {strides = array<i32>} : memref<8x128xf32, #tpu.memory_space<vmem>>, vector<8x128xf32>,
    return
  }
  func.func @transform_0(%arg0: i32, %arg1: i32) -> (i32, i32) {
    %c0_i32 = arith.constant 0 : i32
    %c0_i32_0 = arith.constant 0 : i32
    return %arg0, %c0_i32 : i32, i32
  }
  func.func @transform_1(%arg0: i32, %arg1: i32) -> (i32, i32) {
    %c0_i32 = arith.constant 0 : i32
    %c0_i32_0 = arith.constant 0 : i32
    %c0_i32_1 = arith.constant 0 : i32
    return %c0_i32, %c0_i32_0 : i32, i32
  }
  func.func @transform_2(%arg0: i32, %arg1: i32) -> (i32, i32) {
    %c0_i32 = arith.constant 0 : i32
    return %arg0, %arg1 : i32, i32
  }
  func.func @transform_3(%arg0: i32, %arg1: i32) -> (i32, i32) {
    %c0_i32 = arith.constant 0 : i32
    return %arg0, %arg1 : i32, i32
  }
}

</mosaic_0001>

<llo_original>
// kernel: tpu_custom_call.1
$region0: #{tpu_custom_call.1}
  #allocation0 [shape = 'u32[]', space=smem, size = 0x4, offset = 0x4, fixed_abs, tag = 'smem constant byte address 0x4 - core index']
  #allocation1 [shape = 'u32[144,128]{1,0:T(1,128)}', space=vmem, size = 0x12000, scoped, tag = 'internal scratch']
  %s0 = inlined_call_operand.vmem [shape: f32[8,32], index: 0, kind: input, shape index: {}]
  %s1 = inlined_call_operand.vmem [shape: f32[128,32], index: 1, kind: input, shape index: {}]
  %s2 = inlined_call_operand.vmem [shape: f32[8,128], index: 2, kind: input, shape index: {}]
  %s3 = inlined_call_operand.hbm [shape: f32[8,128], index: 3, kind: output, shape index: {}]
  %s4 = sld [smem:[#allocation0]]
  $region22: #{tpu_custom_call.1} parent=0
    _
  %s6 = ssub.s32 1, %s4
  %s7 = scalar_select 0, %s6, %s4
  $region1: #{tpu_custom_call.1} parent=0
    #allocation2 [shape = 'u8[4096]{0}', space=vmem, size = 0x1000, scoped, tag = 'output window, operand 0, single buffered']
    #allocation3 [shape = 's32[1]{0}', space=sflag, size = 0x4, scoped, tag = 'scoped memory for tpu_custom_call.1']
    %8 = vsyncpa [#allocation3], 0
    // Predicated region
    $region2: #{tpu_custom_call.1} parent=1 // pred_check
      _
    $region3: #{tpu_custom_call.1} parent=1 // pred_check_branch
      %10 = sbr.rel (0) target = $region5
    $region4: #{tpu_custom_call.1} parent=1 // pred_region
      _
    $region5: #{tpu_custom_call.1} parent=1 // pred_fallthru
      _
    // Predicated region
    $region6: #{tpu_custom_call.1} parent=1 // pred_check
      _
    $region7: #{tpu_custom_call.1} parent=1 // pred_check_branch
      %12 = sbr.rel (0) target = $region9
    $region8: #{tpu_custom_call.1} parent=1 // pred_region
      _
    $region9: #{tpu_custom_call.1} parent=1 // pred_fallthru
      _
    // Predicated region
    $region10: #{tpu_custom_call.1} parent=1 // pred_check
      _
    $region11: #{tpu_custom_call.1} parent=1 // pred_check_branch
      %14 = sbr.rel (0) target = $region13
    $region12: #{tpu_custom_call.1} parent=1 // pred_region
      _
    $region13: #{tpu_custom_call.1} parent=1 // pred_fallthru
      _
    %v15 = vld [vmem:[%s0] sm:$0xff]
    %v16 = vmul.f32 %v15, %v15
    %vm17 = vcmask 261120
    %v18 = vsel %vm17, %v16, 0.0
    %19 = vadd.xlane.f32.xlu0 %v18
    %v20 = vpop.xlane.xlu0 %19
    %v21 = vmax.f32 %v20, 1e-24
    %v22 = vrsqrt.pop %v21
    %v23 = vmul.f32 %v22, 10.0
    %v24 = vmul.f32 %v15, %v23
    %s25 = smul.u32 0, 128
    %s26 = scalar_lea.vmem %s1, %s25
    %v27 = vld [vmem:[%s26] sm:$0xff]
    %v28 = vld [vmem:[%s26 + $0x8] sm:$0xff]
    %v29 = vld [vmem:[%s26 + $0x10] sm:$0xff]
    %v30 = vld [vmem:[%s26 + $0x18] sm:$0xff]
    %v31 = vld [vmem:[%s26 + $0x20] sm:$0xff]
    %v32 = vld [vmem:[%s26 + $0x28] sm:$0xff]
    %v33 = vld [vmem:[%s26 + $0x30] sm:$0xff]
    %v34 = vld [vmem:[%s26 + $0x38] sm:$0xff]
    %v35 = vld [vmem:[%s26 + $0x40] sm:$0xff]
    %v36 = vld [vmem:[%s26 + $0x48] sm:$0xff]
    %v37 = vld [vmem:[%s26 + $0x50] sm:$0xff]
    %v38 = vld [vmem:[%s26 + $0x58] sm:$0xff]
    %v39 = vld [vmem:[%s26 + $0x60] sm:$0xff]
    %v40 = vld [vmem:[%s26 + $0x68] sm:$0xff]
    %v41 = vld [vmem:[%s26 + $0x70] sm:$0xff]
    %v42 = vld [vmem:[%s26 + $0x78] sm:$0xff]
    %v43 = vmul.f32 %v27, %v27
    %v44 = vmul.f32 %v28, %v28
    %v45 = vmul.f32 %v29, %v29
    %v46 = vmul.f32 %v30, %v30
    %v47 = vmul.f32 %v31, %v31
    %v48 = vmul.f32 %v32, %v32
    %v49 = vmul.f32 %v33, %v33
    %v50 = vmul.f32 %v34, %v34
    %v51 = vmul.f32 %v35, %v35
    %v52 = vmul.f32 %v36, %v36
    %v53 = vmul.f32 %v37, %v37
    %v54 = vmul.f32 %v38, %v38
    %v55 = vmul.f32 %v39, %v39
    %v56 = vmul.f32 %v40, %v40
    %v57 = vmul.f32 %v41, %v41
    %v58 = vmul.f32 %v42, %v42
    %v59 = vsel %vm17, %v43, 0.0
    %60 = vadd.xlane.f32.xlu0 %v59
    %v61 = vpop.xlane.xlu0 %60
    %v62 = vsel %vm17, %v44, 0.0
    %63 = vadd.xlane.f32.xlu0 %v62
    %v64 = vpop.xlane.xlu0 %63
    %v65 = vsel %vm17, %v45, 0.0
    %66 = vadd.xlane.f32.xlu0 %v65
    %v67 = vpop.xlane.xlu0 %66
    %v68 = vsel %vm17, %v46, 0.0
    %69 = vadd.xlane.f32.xlu0 %v68
    %v70 = vpop.xlane.xlu0 %69
    %v71 = vsel %vm17, %v47, 0.0
    %72 = vadd.xlane.f32.xlu0 %v71
    %v73 = vpop.xlane.xlu0 %72
    %v74 = vsel %vm17, %v48, 0.0
    %75 = vadd.xlane.f32.xlu0 %v74
    %v76 = vpop.xlane.xlu0 %75
    %v77 = vsel %vm17, %v49, 0.0
    %78 = vadd.xlane.f32.xlu0 %v77
    %v79 = vpop.xlane.xlu0 %78
    %v80 = vsel %vm17, %v50, 0.0
    %81 = vadd.xlane.f32.xlu0 %v80
    %v82 = vpop.xlane.xlu0 %81
    %v83 = vsel %vm17, %v51, 0.0
    %84 = vadd.xlane.f32.xlu0 %v83
    %v85 = vpop.xlane.xlu0 %84
    %v86 = vsel %vm17, %v52, 0.0
    %87 = vadd.xlane.f32.xlu0 %v86
    %v88 = vpop.xlane.xlu0 %87
    %v89 = vsel %vm17, %v53, 0.0
    %90 = vadd.xlane.f32.xlu0 %v89
    %v91 = vpop.xlane.xlu0 %90
    %v92 = vsel %vm17, %v54, 0.0
    %93 = vadd.xlane.f32.xlu0 %v92
    %v94 = vpop.xlane.xlu0 %93
    %v95 = vsel %vm17, %v55, 0.0
    %96 = vadd.xlane.f32.xlu0 %v95
    %v97 = vpop.xlane.xlu0 %96
    %v98 = vsel %vm17, %v56, 0.0
    %99 = vadd.xlane.f32.xlu0 %v98
    %v100 = vpop.xlane.xlu0 %99
    %v101 = vsel %vm17, %v57, 0.0
    %102 = vadd.xlane.f32.xlu0 %v101
    %v103 = vpop.xlane.xlu0 %102
    %v104 = vsel %vm17, %v58, 0.0
    %105 = vadd.xlane.f32.xlu0 %v104
    %v106 = vpop.xlane.xlu0 %105
    %v107 = vmax.f32 %v61, 1e-24
    %v108 = vmax.f32 %v64, 1e-24
    %v109 = vmax.f32 %v67, 1e-24
    %v110 = vmax.f32 %v70, 1e-24
    %v111 = vmax.f32 %v73, 1e-24
    %v112 = vmax.f32 %v76, 1e-24
    %v113 = vmax.f32 %v79, 1e-24
    %v114 = vmax.f32 %v82, 1e-24
    %v115 = vmax.f32 %v85, 1e-24
    %v116 = vmax.f32 %v88, 1e-24
    %v117 = vmax.f32 %v91, 1e-24
    %v118 = vmax.f32 %v94, 1e-24
    %v119 = vmax.f32 %v97, 1e-24
    %v120 = vmax.f32 %v100, 1e-24
    %v121 = vmax.f32 %v103, 1e-24
    %v122 = vmax.f32 %v106, 1e-24
    %v123 = vrsqrt.pop %v107
    %v124 = vrsqrt.pop %v108
    %v125 = vrsqrt.pop %v109
    %v126 = vrsqrt.pop %v110
    %v127 = vrsqrt.pop %v111
    %v128 = vrsqrt.pop %v112
    %v129 = vrsqrt.pop %v113
    %v130 = vrsqrt.pop %v114
    %v131 = vrsqrt.pop %v115
    %v132 = vrsqrt.pop %v116
    %v133 = vrsqrt.pop %v117
    %v134 = vrsqrt.pop %v118
    %v135 = vrsqrt.pop %v119
    %v136 = vrsqrt.pop %v120
    %v137 = vrsqrt.pop %v121
    %v138 = vrsqrt.pop %v122
    %v139 = vmul.f32 %v27, %v123
    %v140 = vmul.f32 %v28, %v124
    %v141 = vmul.f32 %v29, %v125
    %v142 = vmul.f32 %v30, %v126
    %v143 = vmul.f32 %v31, %v127
    %v144 = vmul.f32 %v32, %v128
    %v145 = vmul.f32 %v33, %v129
    %v146 = vmul.f32 %v34, %v130
    %v147 = vmul.f32 %v35, %v131
    %v148 = vmul.f32 %v36, %v132
    %v149 = vmul.f32 %v37, %v133
    %v150 = vmul.f32 %v38, %v134
    %v151 = vmul.f32 %v39, %v135
    %v152 = vmul.f32 %v40, %v136
    %v153 = vmul.f32 %v41, %v137
    %v154 = vmul.f32 %v42, %v138
    %v155 = vld [vmem:[%s2] sm:$0xff]
    %v157 = vsel %vm17, %v24, 0
    %v160 = vsel %vm17, %v139, 0
    %v163 = vsel %vm17, %v140, 0
    %v166 = vsel %vm17, %v141, 0
    %v169 = vsel %vm17, %v142, 0
    %v172 = vsel %vm17, %v143, 0
    %v175 = vsel %vm17, %v144, 0
    %v178 = vsel %vm17, %v145, 0
    %v181 = vsel %vm17, %v146, 0
    %v184 = vsel %vm17, %v147, 0
    %v187 = vsel %vm17, %v148, 0
    %v190 = vsel %vm17, %v149, 0
    %v193 = vsel %vm17, %v150, 0
    %v196 = vsel %vm17, %v151, 0
    %v199 = vsel %vm17, %v152, 0
    %v202 = vsel %vm17, %v153, 0
    %v205 = vsel %vm17, %v154, 0
    %207 = vmatprep.subr.mxu0 0.0
    %208 = vmatpush1.xpose.msra.mxu0 %v160
    %209 = vmatprep.subr.mxu0 0.0
    %210 = vmatpush1.xpose.msra.mxu0 %v163
    %211 = vmatprep.subr.mxu0 0.0
    %212 = vmatpush1.xpose.msra.mxu0 %v166
    %213 = vmatprep.subr.mxu0 0.0
    %214 = vmatpush1.xpose.msra.mxu0 %v169
    %215 = vmatprep.subr.mxu0 0.0
    %216 = vmatpush1.xpose.msra.mxu0 %v172
    %217 = vmatprep.subr.mxu0 0.0
    %218 = vmatpush1.xpose.msra.mxu0 %v175
    %219 = vmatprep.subr.mxu0 0.0
    %220 = vmatpush1.xpose.msra.mxu0 %v178
    %221 = vmatprep.subr.mxu0 0.0
    %222 = vmatpush1.xpose.msra.mxu0 %v181
    %223 = vmatprep.subr.mxu0 0.0
    %224 = vmatpush1.xpose.msra.mxu0 %v184
    %225 = vmatprep.subr.mxu0 0.0
    %226 = vmatpush1.xpose.msra.mxu0 %v187
    %227 = vmatprep.subr.mxu0 0.0
    %228 = vmatpush1.xpose.msra.mxu0 %v190
    %229 = vmatprep.subr.mxu0 0.0
    %230 = vmatpush1.xpose.msra.mxu0 %v193
    %231 = vmatprep.subr.mxu0 0.0
    %232 = vmatpush1.xpose.msra.mxu0 %v196
    %233 = vmatprep.subr.mxu0 0.0
    %234 = vmatpush1.xpose.msra.mxu0 %v199
    %235 = vmatprep.subr.mxu0 0.0
    %236 = vmatpush1.xpose.msra.mxu0 %v202
    %237 = vmatprep.subr.mxu0 0.0
    %238 = vmatpush1.xpose.msra.mxu0 %v205
    %239 = vmatprep.subr.mxu0 0.0
    %240 = vmatpush1.xpose.msra.mxu0 0.0
    %241 = vmatprep.subr.mxu0 0.0
    %242 = vmatpush1.xpose.msra.mxu0 0.0
    %243 = vmatprep.subr.mxu0 0.0
    %244 = vmatpush1.xpose.msra.mxu0 0.0
    %245 = vmatprep.subr.mxu0 0.0
    %246 = vmatpush1.xpose.msra.mxu0 0.0
    %247 = vmatprep.subr.mxu0 0.0
    %248 = vmatpush1.xpose.msra.mxu0 0.0
    %249 = vmatprep.subr.mxu0 0.0
    %250 = vmatpush1.xpose.msra.mxu0 0.0
    %251 = vmatprep.subr.mxu0 0.0
    %252 = vmatpush1.xpose.msra.mxu0 0.0
    %253 = vmatprep.subr.mxu0 0.0
    %254 = vmatpush1.xpose.msra.mxu0 0.0
    %255 = vmatprep.subr.mxu0 0.0
    %256 = vmatpush1.xpose.msra.mxu0 0.0
    %257 = vmatprep.subr.mxu0 0.0
    %258 = vmatpush1.xpose.msra.mxu0 0.0
    %259 = vmatprep.subr.mxu0 0.0
    %260 = vmatpush1.xpose.msra.mxu0 0.0
    %261 = vmatprep.subr.mxu0 0.0
    %262 = vmatpush1.xpose.msra.mxu0 0.0
    %263 = vmatprep.subr.mxu0 0.0
    %264 = vmatpush1.xpose.msra.mxu0 0.0
    %265 = vmatprep.subr.mxu0 0.0
    %266 = vmatpush1.xpose.msra.mxu0 0.0
    %267 = vmatprep.subr.mxu0 0.0
    %268 = vmatpush1.xpose.msra.mxu0 0.0
    %269 = vmatprep.subr.mxu0 0.0
    %270 = vmatpush1.xpose.msra.mxu0 0.0
    %271 = vmatprep.mubr.f32.mxu0 0.0
    %272 = vmatmul.mubr.f32.gmra.mrb[0].mxu0 %v157
    %v273 = vpop.f32.mrb[0].mxu0
    %v274 = vadd.f32 0.0, %v273
    %v275 = vpop.f32.mrb[0].mxu0
    %276 = vdwg.mxu0
    %v277 = vmax.f32 %v274, 0.0
    %v278 = vmul.f32 %v274, %v155
    %v279 = vsub.f32 %v277, %v278
    %v280 = vand.u32 2147483647, %v274
    %v281 = vsub.f32 0.0, %v280
    %v282 = vmul.f32 %v281, 1.442695
    %v283 = vpow.pop %v282
    %v284 = vadd.f32 %v283, 1.0
    %v285 = vlog2.pop %v284
    %v286 = vmul.f32 %v285, 0.6931472
    %v287 = vmul.f32 -0.5, %v283
    %v288 = vadd.f32 %v287, 1.0
    %v289 = vmul.f32 %v288, %v283
    %v290 = vand.u32 2147483647, %v283
    %vm291 = vcmp.lt.f32.partialorder %v290, 0.0004427343
    %v292 = vsel %vm291, %v289, %v286
    %v293 = vadd.f32 %v279, %v292
    %v294 = vlaneseq
    %v295 = vand.u32 %v294, 127
    %v296 = vstv %s25
    %v297 = vadd.s32 %v295, %v296
    %vm298 = vcmp.lt.s32.totalorder %v297, 16
    %v299 = vsel %vm298, %v293, 0.0
    %v300 = vadd.f32 %v299, 0.0
    %301 = vst [vmem:[#allocation2] sm:$0xff] %v300
    // Predicated region
    $region14: #{tpu_custom_call.1} parent=1 // pred_check
      _
    $region15: #{tpu_custom_call.1} parent=1 // pred_check_branch
      %303 = sbr.rel (0) target = $region17
    $region16: #{tpu_custom_call.1} parent=1 // pred_region
      %s305 = ssub.s32 128, 128
      %306 = vsyncadd [#allocation3], %s305
      %s308 = sshll.u32 [#allocation2], 4
      %s309 = int_to_ptr.vmem [resolvable:$true] %s308
      %311 = dma.vmem_to_hbm [thread:$0]  %s309, 128, %s3, [#allocation3]
    $region17: #{tpu_custom_call.1} parent=1 // pred_fallthru
      _
    // Predicated region
    $region18: #{tpu_custom_call.1} parent=1 // pred_check
      _
    $region19: #{tpu_custom_call.1} parent=1 // pred_check_branch
      %313 = sbr.rel (0) target = $region21
    $region20: #{tpu_custom_call.1} parent=1 // pred_region
      %314 = dma.done [#allocation3], 128
    $region21: #{tpu_custom_call.1} parent=1 // pred_fallthru
      _
    %315 = vsyncpa [#allocation3], 1

</llo_original>
